<compile_context>
chip_gen: v6e
topology: v6e:2x2x1
jax: 0.10.0
libtpu: 0.0.40
codegen_flags: <defaults>
</compile_context>

<pallas_src>
import functools

import jax
import jax.numpy as jnp
from jax import lax
from jax.experimental import pallas as pl
from jax.experimental.pallas import tpu as pltpu

CP = 8  # channel count padded to one f32 sublane tile (planes == 8)


def _rebuffi_block_kernel(W, x_ref, m_ref, w1_ref, w2_ref, out_ref, cols_ref):
    """One grid step = B images, all data in (channels, pixels) layout.

    x_ref    : (B, CP, HW)     inputs; channel `Cin` of each slab is all-ones
    m_ref    : (16, HW)        rows 0:9 = per-tap border masks (f32 0/1)
    w1_ref   : (Cout, 10*CP)   conv1 (+alfa1, bn1 scale+offset) im2col weight
    w2_ref   : (Cout, 10*CP)   conv2 (+alfa2, bn2) weight; trailing CP columns
                               carry (downsample+alfa3)*bn3-scale and offsets
    out_ref  : (B, Cout, HW)   outputs
    cols_ref : (10*CP, B*HW)   VMEM scratch, im2col matrix
                               rows [0, 9*CP)     : 9 shifted taps
                               rows [9*CP, 10*CP) : resident copy of x
    """
    B, C, HW = x_ref.shape
    taps = [(dh, dw) for dh in (-1, 0, 1) for dw in (-1, 0, 1)]
    masks = m_ref[...]                                   # (16, HW), 1 load/step

    def im2col(img, b):
        # Write the 9 shifted/masked taps of one (C, HW) slab into cols rows
        # [0, 9*C) at lane offset b*HW.  Shifts use pltpu.roll (XLU) instead
        # of misaligned loads; the roll wrap-around and the image borders are
        # both handled by the precomputed per-tap masks.  All slices are
        # sublane/lane aligned (C == 8, HW multiple of 128) -> unmasked vst.
        for t, (dh, dw) in enumerate(taps):
            if dh == 0 and dw == 0:
                tap = img                                # centre: no shift/mask
            else:
                shift = (-(dh * W + dw)) % HW            # static, > 0
                tap = pltpu.roll(img, shift=shift, axis=1) * masks[t:t + 1, :]
            cols_ref[t * C:(t + 1) * C, b * HW:(b + 1) * HW] = tap

    # ---- phase 1: conv1 + alfa1, bn1 scale/offset folded into w1_ref -------
    for b in range(B):
        xc = x_ref[b]                                    # (CP, HW)
        im2col(xc, b)
        # Park x in the trailing CP rows: conv2's matmul reads it for the
        # residual path (downsample + alfa3, bn3) and the folded bn offsets
        # (via the all-ones channel).  Rewritten every step -> no reliance on
        # scratch persistence across grid steps (megacore-safe).
        cols_ref[9 * C:10 * C, b * HW:(b + 1) * HW] = xc

    y = jnp.maximum(
        jnp.dot(w1_ref[...], cols_ref[...],
                preferred_element_type=jnp.float32), 0.0)        # (Cout, B*HW)

    # ---- phase 2: conv2 + alfa2 + residual, bn2/bn3 folded into w2_ref -----
    for b in range(B):
        im2col(y[:, b * HW:(b + 1) * HW], b)             # overwrites rows 0:72

    out = jnp.maximum(
        jnp.dot(w2_ref[...], cols_ref[...],
                preferred_element_type=jnp.float32), 0.0)        # (Cout, B*HW)

    for b in range(B):
        out_ref[b] = out[:, b * HW:(b + 1) * HW]         # lane-dense 256 store


def basic_rebuffi_block(x_nchw, params, max_images_per_step=8):
    """NCHW in / NCHW out.  Wrapper does only weight folding, a tiny channel
    pad (+ ones channel) and free row-major reshapes."""
    N, Cin, H, W = x_nchw.shape
    Cout = params["w1"].shape[-1]
    assert Cin < CP and Cout == CP, "kernel written for in_planes<8, planes=8"
    HW = H * W
    assert HW % 128 == 0, "pixels-in-lane layout needs H*W % 128 == 0"

    # Images per grid step: amortize per-step overhead, but keep >= 2 grid
    # steps whenever N >= 2 so both v7x TensorCores get work.
    B = max(1, min(max_images_per_step, -(-N // 2)))
    Ng = -(-N // B)
    Np = Ng * B

    ONES = Cin  # index of the constant all-ones channel inside the CP slab

    # (N, Cin, H, W) -> (Np, CP, H*W): row-major reshape is free; channel pad
    # + ones channel + batch pad are a few KB of work, no transposes.
    x = x_nchw.astype(jnp.float32).reshape(N, Cin, HW)
    xp = jnp.zeros((Np, CP, HW), jnp.float32)
    xp = xp.at[:N, :Cin].set(x)
    xp = xp.at[:, ONES].set(1.0)

    s1, o1 = params["bn1"][0], params["bn1"][1]
    s2, o2 = params["bn2"][0], params["bn2"][1]
    s3, o3 = params["bn3"][0], params["bn3"][1]

    # conv1: fold alfa1 into the centre tap, pad Cin->CP, reorder to
    # (Cout, 9*CP) im2col layout (tap-major, channel-minor), fold bn1 scale,
    # put the bn1 offset on the ones channel of the centre tap.  Trailing CP
    # columns (the resident x copy) are zero for conv1.
    w1 = params["w1"].at[1, 1].add(params["a1"])                  # (3,3,Cin,Cout)
    w1 = jnp.zeros((3, 3, CP, Cout), jnp.float32).at[:, :, :Cin, :].set(w1)
    w1f = jnp.transpose(w1, (3, 0, 1, 2)).reshape(Cout, 9 * CP) * s1[:, None]
    w1f = w1f.at[:, 4 * CP + ONES].set(o1)
    w1_aug = jnp.concatenate([w1f, jnp.zeros((Cout, CP), jnp.float32)], axis=1)

    # conv2: fold alfa2 into the centre tap, fold bn2 scale.  Trailing CP
    # columns act on the resident x copy: (downsample + alfa3)*bn3-scale on
    # the real channels, (bn2 offset + bn3 offset) on the ones channel.
    w2 = params["w2"].at[1, 1].add(params["a2"])                  # (3,3,Cout,Cout)
    w2f = jnp.transpose(w2, (3, 0, 1, 2)).reshape(Cout, 9 * Cout) * s2[:, None]
    wres = (params["wd"] + params["a3"]).T * s3[:, None]          # (Cout, Cin)
    tail = jnp.zeros((Cout, CP), jnp.float32)
    tail = tail.at[:, :Cin].set(wres)
    tail = tail.at[:, ONES].set(o2 + o3)
    w2_aug = jnp.concatenate([w2f, tail], axis=1)                 # (Cout, 80)

    # Per-tap border masks (hoisted out of the kernel); padded to 16 rows.
    hh = jnp.arange(HW, dtype=jnp.int32) // W
    ww = jnp.arange(HW, dtype=jnp.int32) % W
    rows = []
    for dh in (-1, 0, 1):
        for dw in (-1, 0, 1):
            m = jnp.ones((HW,), jnp.float32)
            if dh == -1:
                m = m * (hh > 0)
            if dh == 1:
                m = m * (hh < H - 1)
            if dw == -1:
                m = m * (ww > 0)
            if dw == 1:
                m = m * (ww < W - 1)
            rows.append(m)
    masks = jnp.zeros((16, HW), jnp.float32).at[:9].set(jnp.stack(rows))

    kernel = functools.partial(_rebuffi_block_kernel, W)

    grid_spec = pltpu.PrefetchScalarGridSpec(
        num_scalar_prefetch=0,
        grid=(Ng,),
        in_specs=[
            pl.BlockSpec((B, CP, HW), lambda n: (n, 0, 0)),
            pl.BlockSpec((16, HW), lambda n: (0, 0)),
            pl.BlockSpec((Cout, 10 * CP), lambda n: (0, 0)),
            pl.BlockSpec((Cout, 10 * CP), lambda n: (0, 0)),
        ],
        out_specs=pl.BlockSpec((B, Cout, HW), lambda n: (n, 0, 0)),
        scratch_shapes=[
            pltpu.VMEM((10 * CP, B * HW), jnp.float32),   # im2col matrix
        ],
    )

    out = pl.pallas_call(
        kernel,
        out_shape=jax.ShapeDtypeStruct((Np, Cout, HW), jnp.float32),
        grid_spec=grid_spec,
        compiler_params=pltpu.CompilerParams(
            dimension_semantics=("parallel",)),
    )(xp, masks, w1_aug, w2_aug)

    return out[:N].reshape(N, Cout, H, W)      # already NCHW; reshape is free


# ---------------------------- pure-JAX reference -----------------------------
def ref_forward(x_nchw, params):
    x = jnp.transpose(x_nchw, (0, 2, 3, 1)).astype(jnp.float32)
    dn = ("NHWC", "HWIO", "NHWC")
    conv3 = lambda v, w: lax.conv_general_dilated(
        v, w, (1, 1), "SAME", dimension_numbers=dn)
    conv1 = lambda v, w: jnp.einsum("nhwi,io->nhwo", v, w)
    bn = lambda v, p: v * p[0] + p[1]

    residual = conv1(x, params["wd"]) + conv1(x, params["a3"])
    residual = bn(residual, params["bn3"])
    out = conv3(x, params["w1"]) + conv1(x, params["a1"])
    out = jnp.maximum(bn(out, params["bn1"]), 0.0)
    y = out
    out = conv3(out, params["w2"]) + conv1(y, params["a2"])
    out = bn(out, params["bn2"])
    out = jnp.maximum(out + residual, 0.0)
    return jnp.transpose(out, (0, 3, 1, 2))


# ---------------------------- deterministic params ---------------------------
def make_params(key, cin, cout):
    ks = jax.random.split(key, 16)

    def bn_affine(kg, kb, km, kv, c):
        gamma = 1.0 + 0.1 * jax.random.normal(kg, (c,), jnp.float32)
        beta = 0.1 * jax.random.normal(kb, (c,), jnp.float32)
        mean = 0.1 * jax.random.normal(km, (c,), jnp.float32)
        var = jax.random.uniform(kv, (c,), jnp.float32, 0.5, 1.5)
        scale = gamma / jnp.sqrt(var + 1e-5)
        offset = beta - mean * scale
        return jnp.stack([scale, offset])                 # (2, c)

    s = 0.2
    return {
        "w1": s * jax.random.normal(ks[0], (3, 3, cin, cout), jnp.float32),
        "a1": s * jax.random.normal(ks[1], (cin, cout), jnp.float32),
        "w2": s * jax.random.normal(ks[2], (3, 3, cout, cout), jnp.float32),
        "a2": s * jax.random.normal(ks[3], (cout, cout), jnp.float32),
        "wd": s * jax.random.normal(ks[4], (cin, cout), jnp.float32),
        "a3": s * jax.random.normal(ks[5], (cin, cout), jnp.float32),
        "bn1": bn_affine(ks[6], ks[7], ks[8], ks[9], cout),
        "bn2": bn_affine(ks[10], ks[11], ks[12], ks[13], cout),
        "bn3": bn_affine(ks[14], ks[15], ks[6], ks[7], cout),
    }


if __name__ == "__main__":
    key = jax.random.PRNGKey(0)
    kx, kx2, kp = jax.random.split(key, 3)

    Cin, H, W = 4, 16, 16
    Cout = 8  # planes != in_planes  ->  self.first == True
    params = make_params(kp, Cin, Cout)

    # primary check: batch=2 (B=1 per step, grid=2)
    N = 2
    x = jax.random.normal(kx, (N, Cin, H, W), jnp.float32)   # NCHW like PyTorch
    out = jax.block_until_ready(basic_rebuffi_block(x, params))
    ref = jax.block_until_ready(ref_forward(x, params))
    assert out.shape == (N, Cout, H, W), out.shape
    assert jnp.allclose(out, ref, atol=1e-4, rtol=1e-4), (
        float(jnp.max(jnp.abs(out - ref))))

    # extra check exercising the batched path (B=4 images per grid step)
    N2 = 8
    x2 = jax.random.normal(kx2, (N2, Cin, H, W), jnp.float32)
    out2 = jax.block_until_ready(basic_rebuffi_block(x2, params))
    ref2 = jax.block_until_ready(ref_forward(x2, params))
    assert out2.shape == (N2, Cout, H, W), out2.shape
    assert jnp.allclose(out2, ref2, atol=1e-4, rtol=1e-4), (
        float(jnp.max(jnp.abs(out2 - ref2))))

    print("KERNEL_OK")
</pallas_src>

<mosaic_0001>
module attributes {stable_mosaic.version = 11 : i64} {
  func.func @_rebuffi_block_kernel(%arg0: i32, %arg1: memref<1x8x256xf32, #tpu.memory_space<vmem>>, %arg2: memref<16x256xf32, #tpu.memory_space<vmem>>, %arg3: memref<8x80xf32, #tpu.memory_space<vmem>>, %arg4: memref<8x80xf32, #tpu.memory_space<vmem>>, %arg5: memref<1x8x256xf32, #tpu.memory_space<vmem>>, %arg6: memref<80x256xf32, #tpu.memory_space<vmem>>) attributes {dimension_semantics = [#tpu.dimension_semantics<parallel>], iteration_bounds = array<i64: 2>, scalar_prefetch = 0 : i64, scratch_operands = 1 : i64, tpu.core_type = #tpu.core_type<tc>, window_params = [{transform_indices = @transform_0, window_bounds = array<i64: 1, 8, 256>}, {pipeline_mode = #tpu.pipeline_mode<synchronous>, transform_indices = @transform_1, window_bounds = array<i64: 16, 256>}, {pipeline_mode = #tpu.pipeline_mode<synchronous>, transform_indices = @transform_2, window_bounds = array<i64: 8, 80>}, {pipeline_mode = #tpu.pipeline_mode<synchronous>, transform_indices = @transform_3, window_bounds = array<i64: 8, 80>}, {transform_indices = @transform_4, window_bounds = array<i64: 1, 8, 256>}]} {
    %c0 = arith.constant 0 : index
    %c0_0 = arith.constant 0 : index
    %0 = vector.load %arg2[%c0, %c0_0] : memref<16x256xf32, #tpu.memory_space<vmem>>, vector<16x256xf32>
    %c0_1 = arith.constant 0 : index
    %c0_2 = arith.constant 0 : index
    %c0_3 = arith.constant 0 : index
    %1 = vector.load %arg1[%c0_1, %c0_2, %c0_3] : memref<1x8x256xf32, #tpu.memory_space<vmem>>, vector<1x8x256xf32>
    %2 = vector.shape_cast %1 : vector<1x8x256xf32> to vector<8x256xf32>
    %c17_i32 = arith.constant 17 : i32
    %3 = tpu.dynamic_rotate %2 by %c17_i32 dim 1 : vector<8x256xf32>, i32 -> vector<8x256xf32>
    %4 = vector.extract_strided_slice %0 {offsets = [0, 0], sizes = [1, 256], strides = [1, 1]} : vector<16x256xf32> to vector<1x256xf32>
    %5 = vector.broadcast %4 : vector<1x256xf32> to vector<8x256xf32>
    %6 = arith.mulf %3, %5 : vector<8x256xf32>
    %c0_4 = arith.constant 0 : index
    %c0_5 = arith.constant 0 : index
    %7 = vector.load %arg6[%c0_4, %c0_5] : memref<80x256xf32, #tpu.memory_space<vmem>>, vector<8x256xf32>
    tpu.vector_store %arg6[%c0_4, %c0_5], %6 {strides = array<i32>} : memref<80x256xf32, #tpu.memory_space<vmem>>, vector<8x256xf32>,
    %c16_i32 = arith.constant 16 : i32
    %8 = tpu.dynamic_rotate %2 by %c16_i32 dim 1 : vector<8x256xf32>, i32 -> vector<8x256xf32>
    %9 = vector.extract_strided_slice %0 {offsets = [1, 0], sizes = [1, 256], strides = [1, 1]} : vector<16x256xf32> to vector<1x256xf32>
    %10 = vector.broadcast %9 : vector<1x256xf32> to vector<8x256xf32>
    %11 = arith.mulf %8, %10 : vector<8x256xf32>
    %c8 = arith.constant 8 : index
    %c0_6 = arith.constant 0 : index
    %12 = vector.load %arg6[%c8, %c0_6] : memref<80x256xf32, #tpu.memory_space<vmem>>, vector<8x256xf32>
    tpu.vector_store %arg6[%c8, %c0_6], %11 {strides = array<i32>} : memref<80x256xf32, #tpu.memory_space<vmem>>, vector<8x256xf32>,
    %c15_i32 = arith.constant 15 : i32
    %13 = tpu.dynamic_rotate %2 by %c15_i32 dim 1 : vector<8x256xf32>, i32 -> vector<8x256xf32>
    %14 = vector.extract_strided_slice %0 {offsets = [2, 0], sizes = [1, 256], strides = [1, 1]} : vector<16x256xf32> to vector<1x256xf32>
    %15 = vector.broadcast %14 : vector<1x256xf32> to vector<8x256xf32>
    %16 = arith.mulf %13, %15 : vector<8x256xf32>
    %c16 = arith.constant 16 : index
    %c0_7 = arith.constant 0 : index
    %17 = vector.load %arg6[%c16, %c0_7] : memref<80x256xf32, #tpu.memory_space<vmem>>, vector<8x256xf32>
    tpu.vector_store %arg6[%c16, %c0_7], %16 {strides = array<i32>} : memref<80x256xf32, #tpu.memory_space<vmem>>, vector<8x256xf32>,
    %c1_i32 = arith.constant 1 : i32
    %18 = tpu.dynamic_rotate %2 by %c1_i32 dim 1 : vector<8x256xf32>, i32 -> vector<8x256xf32>
    %19 = vector.extract_strided_slice %0 {offsets = [3, 0], sizes = [1, 256], strides = [1, 1]} : vector<16x256xf32> to vector<1x256xf32>
    %20 = vector.broadcast %19 : vector<1x256xf32> to vector<8x256xf32>
    %21 = arith.mulf %18, %20 : vector<8x256xf32>
    %c24 = arith.constant 24 : index
    %c0_8 = arith.constant 0 : index
    %22 = vector.load %arg6[%c24, %c0_8] : memref<80x256xf32, #tpu.memory_space<vmem>>, vector<8x256xf32>
    tpu.vector_store %arg6[%c24, %c0_8], %21 {strides = array<i32>} : memref<80x256xf32, #tpu.memory_space<vmem>>, vector<8x256xf32>,
    %c32 = arith.constant 32 : index
    %c0_9 = arith.constant 0 : index
    %23 = vector.load %arg6[%c32, %c0_9] : memref<80x256xf32, #tpu.memory_space<vmem>>, vector<8x256xf32>
    tpu.vector_store %arg6[%c32, %c0_9], %2 {strides = array<i32>} : memref<80x256xf32, #tpu.memory_space<vmem>>, vector<8x256xf32>,
    %c255_i32 = arith.constant 255 : i32
    %24 = tpu.dynamic_rotate %2 by %c255_i32 dim 1 : vector<8x256xf32>, i32 -> vector<8x256xf32>
    %25 = vector.extract_strided_slice %0 {offsets = [5, 0], sizes = [1, 256], strides = [1, 1]} : vector<16x256xf32> to vector<1x256xf32>
    %26 = vector.broadcast %25 : vector<1x256xf32> to vector<8x256xf32>
    %27 = arith.mulf %24, %26 : vector<8x256xf32>
    %c40 = arith.constant 40 : index
    %c0_10 = arith.constant 0 : index
    %28 = vector.load %arg6[%c40, %c0_10] : memref<80x256xf32, #tpu.memory_space<vmem>>, vector<8x256xf32>
    tpu.vector_store %arg6[%c40, %c0_10], %27 {strides = array<i32>} : memref<80x256xf32, #tpu.memory_space<vmem>>, vector<8x256xf32>,
    %c241_i32 = arith.constant 241 : i32
    %29 = tpu.dynamic_rotate %2 by %c241_i32 dim 1 : vector<8x256xf32>, i32 -> vector<8x256xf32>
    %30 = vector.extract_strided_slice %0 {offsets = [6, 0], sizes = [1, 256], strides = [1, 1]} : vector<16x256xf32> to vector<1x256xf32>
    %31 = vector.broadcast %30 : vector<1x256xf32> to vector<8x256xf32>
    %32 = arith.mulf %29, %31 : vector<8x256xf32>
    %c48 = arith.constant 48 : index
    %c0_11 = arith.constant 0 : index
    %33 = vector.load %arg6[%c48, %c0_11] : memref<80x256xf32, #tpu.memory_space<vmem>>, vector<8x256xf32>
    tpu.vector_store %arg6[%c48, %c0_11], %32 {strides = array<i32>} : memref<80x256xf32, #tpu.memory_space<vmem>>, vector<8x256xf32>,
    %c240_i32 = arith.constant 240 : i32
    %34 = tpu.dynamic_rotate %2 by %c240_i32 dim 1 : vector<8x256xf32>, i32 -> vector<8x256xf32>
    %35 = vector.extract_strided_slice %0 {offsets = [7, 0], sizes = [1, 256], strides = [1, 1]} : vector<16x256xf32> to vector<1x256xf32>
    %36 = vector.broadcast %35 : vector<1x256xf32> to vector<8x256xf32>
    %37 = arith.mulf %34, %36 : vector<8x256xf32>
    %c56 = arith.constant 56 : index
    %c0_12 = arith.constant 0 : index
    %38 = vector.load %arg6[%c56, %c0_12] : memref<80x256xf32, #tpu.memory_space<vmem>>, vector<8x256xf32>
    tpu.vector_store %arg6[%c56, %c0_12], %37 {strides = array<i32>} : memref<80x256xf32, #tpu.memory_space<vmem>>, vector<8x256xf32>,
    %c239_i32 = arith.constant 239 : i32
    %39 = tpu.dynamic_rotate %2 by %c239_i32 dim 1 : vector<8x256xf32>, i32 -> vector<8x256xf32>
    %40 = vector.extract_strided_slice %0 {offsets = [8, 0], sizes = [1, 256], strides = [1, 1]} : vector<16x256xf32> to vector<1x256xf32>
    %41 = vector.broadcast %40 : vector<1x256xf32> to vector<8x256xf32>
    %42 = arith.mulf %39, %41 : vector<8x256xf32>
    %c64 = arith.constant 64 : index
    %c0_13 = arith.constant 0 : index
    %43 = vector.load %arg6[%c64, %c0_13] : memref<80x256xf32, #tpu.memory_space<vmem>>, vector<8x256xf32>
    tpu.vector_store %arg6[%c64, %c0_13], %42 {strides = array<i32>} : memref<80x256xf32, #tpu.memory_space<vmem>>, vector<8x256xf32>,
    %c72 = arith.constant 72 : index
    %c0_14 = arith.constant 0 : index
    %44 = vector.load %arg6[%c72, %c0_14] : memref<80x256xf32, #tpu.memory_space<vmem>>, vector<8x256xf32>
    tpu.vector_store %arg6[%c72, %c0_14], %2 {strides = array<i32>} : memref<80x256xf32, #tpu.memory_space<vmem>>, vector<8x256xf32>,
    %c0_15 = arith.constant 0 : index
    %c0_16 = arith.constant 0 : index
    %45 = vector.load %arg3[%c0_15, %c0_16] : memref<8x80xf32, #tpu.memory_space<vmem>>, vector<8x80xf32>
    %c0_17 = arith.constant 0 : index
    %c0_18 = arith.constant 0 : index
    %46 = vector.load %arg6[%c0_17, %c0_18] : memref<80x256xf32, #tpu.memory_space<vmem>>, vector<80x256xf32>
    %cst = arith.constant dense<0.000000e+00> : vector<8x256xf32>
    %47 = tpu.matmul %45, %46, %cst {dimension_numbers = #tpu.dot_dimension_numbers<[1], [0], [0], [1], [0, 0, 1, 1], [], []>} : vector<8x80xf32>, vector<80x256xf32>, vector<8x256xf32> -> vector<8x256xf32>
    %cst_19 = arith.constant 0.000000e+00 : f32
    %48 = vector.broadcast %cst_19 : f32 to vector<8x256xf32>
    %49 = arith.maximumf %47, %48 : vector<8x256xf32>
    %c17_i32_20 = arith.constant 17 : i32
    %50 = tpu.dynamic_rotate %49 by %c17_i32_20 dim 1 : vector<8x256xf32>, i32 -> vector<8x256xf32>
    %51 = vector.extract_strided_slice %0 {offsets = [0, 0], sizes = [1, 256], strides = [1, 1]} : vector<16x256xf32> to vector<1x256xf32>
    %52 = vector.broadcast %51 : vector<1x256xf32> to vector<8x256xf32>
    %53 = arith.mulf %50, %52 : vector<8x256xf32>
    %c0_21 = arith.constant 0 : index
    %c0_22 = arith.constant 0 : index
    %54 = vector.load %arg6[%c0_21, %c0_22] : memref<80x256xf32, #tpu.memory_space<vmem>>, vector<8x256xf32>
    tpu.vector_store %arg6[%c0_21, %c0_22], %53 {strides = array<i32>} : memref<80x256xf32, #tpu.memory_space<vmem>>, vector<8x256xf32>,
    %c16_i32_23 = arith.constant 16 : i32
    %55 = tpu.dynamic_rotate %49 by %c16_i32_23 dim 1 : vector<8x256xf32>, i32 -> vector<8x256xf32>
    %56 = vector.extract_strided_slice %0 {offsets = [1, 0], sizes = [1, 256], strides = [1, 1]} : vector<16x256xf32> to vector<1x256xf32>
    %57 = vector.broadcast %56 : vector<1x256xf32> to vector<8x256xf32>
    %58 = arith.mulf %55, %57 : vector<8x256xf32>
    %c8_24 = arith.constant 8 : index
    %c0_25 = arith.constant 0 : index
    %59 = vector.load %arg6[%c8_24, %c0_25] : memref<80x256xf32, #tpu.memory_space<vmem>>, vector<8x256xf32>
    tpu.vector_store %arg6[%c8_24, %c0_25], %58 {strides = array<i32>} : memref<80x256xf32, #tpu.memory_space<vmem>>, vector<8x256xf32>,
    %c15_i32_26 = arith.constant 15 : i32
    %60 = tpu.dynamic_rotate %49 by %c15_i32_26 dim 1 : vector<8x256xf32>, i32 -> vector<8x256xf32>
    %61 = vector.extract_strided_slice %0 {offsets = [2, 0], sizes = [1, 256], strides = [1, 1]} : vector<16x256xf32> to vector<1x256xf32>
    %62 = vector.broadcast %61 : vector<1x256xf32> to vector<8x256xf32>
    %63 = arith.mulf %60, %62 : vector<8x256xf32>
    %c16_27 = arith.constant 16 : index
    %c0_28 = arith.constant 0 : index
    %64 = vector.load %arg6[%c16_27, %c0_28] : memref<80x256xf32, #tpu.memory_space<vmem>>, vector<8x256xf32>
    tpu.vector_store %arg6[%c16_27, %c0_28], %63 {strides = array<i32>} : memref<80x256xf32, #tpu.memory_space<vmem>>, vector<8x256xf32>,
    %c1_i32_29 = arith.constant 1 : i32
    %65 = tpu.dynamic_rotate %49 by %c1_i32_29 dim 1 : vector<8x256xf32>, i32 -> vector<8x256xf32>
    %66 = vector.extract_strided_slice %0 {offsets = [3, 0], sizes = [1, 256], strides = [1, 1]} : vector<16x256xf32> to vector<1x256xf32>
    %67 = vector.broadcast %66 : vector<1x256xf32> to vector<8x256xf32>
    %68 = arith.mulf %65, %67 : vector<8x256xf32>
    %c24_30 = arith.constant 24 : index
    %c0_31 = arith.constant 0 : index
    %69 = vector.load %arg6[%c24_30, %c0_31] : memref<80x256xf32, #tpu.memory_space<vmem>>, vector<8x256xf32>
    tpu.vector_store %arg6[%c24_30, %c0_31], %68 {strides = array<i32>} : memref<80x256xf32, #tpu.memory_space<vmem>>, vector<8x256xf32>,
    %c32_32 = arith.constant 32 : index
    %c0_33 = arith.constant 0 : index
    %70 = vector.load %arg6[%c32_32, %c0_33] : memref<80x256xf32, #tpu.memory_space<vmem>>, vector<8x256xf32>
    tpu.vector_store %arg6[%c32_32, %c0_33], %49 {strides = array<i32>} : memref<80x256xf32, #tpu.memory_space<vmem>>, vector<8x256xf32>,
    %c255_i32_34 = arith.constant 255 : i32
    %71 = tpu.dynamic_rotate %49 by %c255_i32_34 dim 1 : vector<8x256xf32>, i32 -> vector<8x256xf32>
    %72 = vector.extract_strided_slice %0 {offsets = [5, 0], sizes = [1, 256], strides = [1, 1]} : vector<16x256xf32> to vector<1x256xf32>
    %73 = vector.broadcast %72 : vector<1x256xf32> to vector<8x256xf32>
    %74 = arith.mulf %71, %73 : vector<8x256xf32>
    %c40_35 = arith.constant 40 : index
    %c0_36 = arith.constant 0 : index
    %75 = vector.load %arg6[%c40_35, %c0_36] : memref<80x256xf32, #tpu.memory_space<vmem>>, vector<8x256xf32>
    tpu.vector_store %arg6[%c40_35, %c0_36], %74 {strides = array<i32>} : memref<80x256xf32, #tpu.memory_space<vmem>>, vector<8x256xf32>,
    %c241_i32_37 = arith.constant 241 : i32
    %76 = tpu.dynamic_rotate %49 by %c241_i32_37 dim 1 : vector<8x256xf32>, i32 -> vector<8x256xf32>
    %77 = vector.extract_strided_slice %0 {offsets = [6, 0], sizes = [1, 256], strides = [1, 1]} : vector<16x256xf32> to vector<1x256xf32>
    %78 = vector.broadcast %77 : vector<1x256xf32> to vector<8x256xf32>
    %79 = arith.mulf %76, %78 : vector<8x256xf32>
    %c48_38 = arith.constant 48 : index
    %c0_39 = arith.constant 0 : index
    %80 = vector.load %arg6[%c48_38, %c0_39] : memref<80x256xf32, #tpu.memory_space<vmem>>, vector<8x256xf32>
    tpu.vector_store %arg6[%c48_38, %c0_39], %79 {strides = array<i32>} : memref<80x256xf32, #tpu.memory_space<vmem>>, vector<8x256xf32>,
    %c240_i32_40 = arith.constant 240 : i32
    %81 = tpu.dynamic_rotate %49 by %c240_i32_40 dim 1 : vector<8x256xf32>, i32 -> vector<8x256xf32>
    %82 = vector.extract_strided_slice %0 {offsets = [7, 0], sizes = [1, 256], strides = [1, 1]} : vector<16x256xf32> to vector<1x256xf32>
    %83 = vector.broadcast %82 : vector<1x256xf32> to vector<8x256xf32>
    %84 = arith.mulf %81, %83 : vector<8x256xf32>
    %c56_41 = arith.constant 56 : index
    %c0_42 = arith.constant 0 : index
    %85 = vector.load %arg6[%c56_41, %c0_42] : memref<80x256xf32, #tpu.memory_space<vmem>>, vector<8x256xf32>
    tpu.vector_store %arg6[%c56_41, %c0_42], %84 {strides = array<i32>} : memref<80x256xf32, #tpu.memory_space<vmem>>, vector<8x256xf32>,
    %c239_i32_43 = arith.constant 239 : i32
    %86 = tpu.dynamic_rotate %49 by %c239_i32_43 dim 1 : vector<8x256xf32>, i32 -> vector<8x256xf32>
    %87 = vector.extract_strided_slice %0 {offsets = [8, 0], sizes = [1, 256], strides = [1, 1]} : vector<16x256xf32> to vector<1x256xf32>
    %88 = vector.broadcast %87 : vector<1x256xf32> to vector<8x256xf32>
    %89 = arith.mulf %86, %88 : vector<8x256xf32>
    %c64_44 = arith.constant 64 : index
    %c0_45 = arith.constant 0 : index
    %90 = vector.load %arg6[%c64_44, %c0_45] : memref<80x256xf32, #tpu.memory_space<vmem>>, vector<8x256xf32>
    tpu.vector_store %arg6[%c64_44, %c0_45], %89 {strides = array<i32>} : memref<80x256xf32, #tpu.memory_space<vmem>>, vector<8x256xf32>,
    %c0_46 = arith.constant 0 : index
    %c0_47 = arith.constant 0 : index
    %91 = vector.load %arg4[%c0_46, %c0_47] : memref<8x80xf32, #tpu.memory_space<vmem>>, vector<8x80xf32>
    %c0_48 = arith.constant 0 : index
    %c0_49 = arith.constant 0 : index
    %92 = vector.load %arg6[%c0_48, %c0_49] : memref<80x256xf32, #tpu.memory_space<vmem>>, vector<80x256xf32>
    %cst_50 = arith.constant dense<0.000000e+00> : vector<8x256xf32>
    %93 = tpu.matmul %91, %92, %cst_50 {dimension_numbers = #tpu.dot_dimension_numbers<[1], [0], [0], [1], [0, 0, 1, 1], [], []>} : vector<8x80xf32>, vector<80x256xf32>, vector<8x256xf32> -> vector<8x256xf32>
    %cst_51 = arith.constant 0.000000e+00 : f32
    %94 = vector.broadcast %cst_51 : f32 to vector<8x256xf32>
    %95 = arith.maximumf %93, %94 : vector<8x256xf32>
    %c0_52 = arith.constant 0 : index
    %c0_53 = arith.constant 0 : index
    %c0_54 = arith.constant 0 : index
    %96 = vector.load %arg5[%c0_52, %c0_53, %c0_54] : memref<1x8x256xf32, #tpu.memory_space<vmem>>, vector<1x8x256xf32>
    %97 = vector.shape_cast %96 : vector<1x8x256xf32> to vector<8x256xf32>
    %98 = vector.shape_cast %95 : vector<8x256xf32> to vector<1x8x256xf32>
    tpu.vector_store %arg5[%c0_52, %c0_53, %c0_54], %98 {strides = array<i32>} : memref<1x8x256xf32, #tpu.memory_space<vmem>>, vector<1x8x256xf32>,
    return
  }
  func.func @transform_0(%arg0: i32) -> (i32, i32, i32) {
    %c0_i32 = arith.constant 0 : i32
    %c0_i32_0 = arith.constant 0 : i32
    %c0_i32_1 = arith.constant 0 : i32
    return %arg0, %c0_i32, %c0_i32_0 : i32, i32, i32
  }
  func.func @transform_1(%arg0: i32) -> (i32, i32) {
    %c0_i32 = arith.constant 0 : i32
    %c0_i32_0 = arith.constant 0 : i32
    %c0_i32_1 = arith.constant 0 : i32
    return %c0_i32, %c0_i32_0 : i32, i32
  }
  func.func @transform_2(%arg0: i32) -> (i32, i32) {
    %c0_i32 = arith.constant 0 : i32
    %c0_i32_0 = arith.constant 0 : i32
    %c0_i32_1 = arith.constant 0 : i32
    return %c0_i32, %c0_i32_0 : i32, i32
  }
  func.func @transform_3(%arg0: i32) -> (i32, i32) {
    %c0_i32 = arith.constant 0 : i32
    %c0_i32_0 = arith.constant 0 : i32
    %c0_i32_1 = arith.constant 0 : i32
    return %c0_i32, %c0_i32_0 : i32, i32
  }
  func.func @transform_4(%arg0: i32) -> (i32, i32, i32) {
    %c0_i32 = arith.constant 0 : i32
    %c0_i32_0 = arith.constant 0 : i32
    %c0_i32_1 = arith.constant 0 : i32
    return %arg0, %c0_i32, %c0_i32_0 : i32, i32, i32
  }
}

</mosaic_0001>

<llo_original>
// kernel: tpu_custom_call.1
$region0: #{tpu_custom_call.1}
  #allocation0 [shape = 'u32[]', space=smem, size = 0x4, offset = 0x4, fixed_abs, tag = 'smem constant byte address 0x4 - core index']
  #allocation1 [shape = 'u32[144,128]{1,0:T(1,128)}', space=vmem, size = 0x12000, scoped, tag = 'internal scratch']
  #allocation2 [shape = 'f32[80,256]{1,0:T(8,128)}', space=vmem, size = 0x14000, scoped, tag = 'scratch operand']
  %s0 = inlined_call_operand.hbm [shape: f32[2,8,256], index: 0, kind: input, shape index: {}]
  %s1 = inlined_call_operand.hbm [shape: f32[16,256], index: 1, kind: input, shape index: {}]
  %s2 = inlined_call_operand.hbm [shape: f32[8,80], index: 2, kind: input, shape index: {}]
  %s3 = inlined_call_operand.hbm [shape: f32[8,80], index: 3, kind: input, shape index: {}]
  %s4 = inlined_call_operand.hbm [shape: f32[2,8,256], index: 4, kind: output, shape index: {}]
  %s5 = sld [smem:[#allocation0]]
  $region65: #{tpu_custom_call.1} parent=0
    _
  %s7 = ssub.s32 1, %s5
  %s8 = scalar_select 0, %s7, %s5
  $region1: #{tpu_custom_call.1} parent=0
    #allocation3 [shape = 'u8[16384]{0}', space=vmem, size = 0x4000, scoped, tag = 'input window, operand 0']
    #allocation4 [shape = 's32[2]{0}', space=sflag, size = 0x8, scoped, tag = 'scoped memory for tpu_custom_call.1']
    #allocation5 [shape = 's32[2]{0}', space=sflag, size = 0x8, scoped, tag = 'scoped memory for tpu_custom_call.1']
    #allocation6 [shape = 'u8[16384]{0}', space=vmem, size = 0x4000, scoped, tag = 'input window, operand 1, single buffered']
    #allocation7 [shape = 's32[1]{0}', space=sflag, size = 0x4, scoped, tag = 'scoped memory for tpu_custom_call.1']
    #allocation8 [shape = 'u8[4096]{0}', space=vmem, size = 0x1000, scoped, tag = 'input window, operand 2, single buffered']
    #allocation9 [shape = 'u8[4096]{0}', space=vmem, size = 0x1000, scoped, tag = 'input window, operand 3, single buffered']
    #allocation10 [shape = 's32[1]{0}', space=sflag, size = 0x4, scoped, tag = 'scoped memory for tpu_custom_call.1']
    #allocation11 [shape = 'u8[16384]{0}', space=vmem, size = 0x4000, scoped, tag = 'output window, operand 0']
    %9 = vsyncpa [#allocation4], 0
    %s10 = scalar_lea.sflag [#allocation4], 1
    %11 = vsyncpa %s10, 0
    %12 = vsyncpa [#allocation7], 0
    %13 = vsyncpa [#allocation10], 0
    %14 = vsyncpa [#allocation5], 0
    %s15 = scalar_lea.sflag [#allocation5], 1
    %16 = vsyncpa %s15, 0
    loop: start=0, step=1, limit=4
    $region2: #{tpu_custom_call.1} parent=1 // loop_pre_header
      _
    $region3: #{tpu_custom_call.1} parent=1 // loop_header
      %s18 = sphi 0, %s22
      %p19 = scmp.ge.s32.totalorder %s18, 4
      %s28 = sphi 0, %s30
      %s31 = sphi 0, %s28
      %s32 = sphi 0, %s31
      %s48 = sphi 0, %s32
      %s52 = sphi 0, %s52
      %s54 = sphi 0, %s52
      %s55 = sphi 0, %s54
      %s69 = sphi 0, %s55
      %s73 = sphi 0, %s73
      %s75 = sphi 0, %s73
      %s76 = sphi 0, %s75
      %s90 = sphi 0, %s76
      %s94 = sphi 0, %s94
      %s96 = sphi 0, %s94
      %s97 = sphi 0, %s96
      %s111 = sphi 0, %s97
      %s117 = sphi 0, %s119
      %s120 = sphi 0, %s117
      %s121 = sphi 0, %s120
      %s137 = sphi 0, %s121
    $region4: #{tpu_custom_call.1} parent=1 // loop_header_branch
      %21 = sbr.rel (%p19) target = $region8
    $region5: #{tpu_custom_call.1} parent=1 // loop_body
      %s23 = ssub.s32 %s18, 1
      %s24 = ssub.s32 %s18, 2
      %s25 = sadd.s32 %s18, 1
      %s26 = ssub.s32 %s18, %s25
      %p27 = scmp.eq.s32.totalorder %s26, 0
      %s29 = sadd.s32 %s28, 1
      %s30 = scalar_select %p27, %s28, %s29
      %p33 = pneg %p27
      %p34 = scmp.eq.s32.totalorder %s18, 1
      %p35 = por %p33, %p34
      %p36 = scmp.ne.s32.totalorder %s28, %s31
      %p37 = scmp.eq.s32.totalorder %s18, 0
      %p38 = por %p36, %p37
      %p39 = scmp.ne.s32.totalorder %s28, %s31
      %p40 = scmp.eq.s32.totalorder %s23, 1
      %p41 = por %p39, %p40
      %p42 = scmp.ne.s32.totalorder %s31, %s32
      %p43 = scmp.eq.s32.totalorder %s23, 0
      %p44 = por %p42, %p43
      %p45 = scmp.ne.s32.totalorder %s31, %s32
      %p46 = scmp.eq.s32.totalorder %s24, 1
      %p47 = por %p45, %p46
      %p49 = scmp.ne.s32.totalorder %s32, %s48
      %p50 = scmp.eq.s32.totalorder %s24, 0
      %p51 = por %p49, %p50
      %s53 = sadd.s32 %s52, 1
      %p56 = scmp.eq.s32.totalorder %s18, 1
      %p57 = scmp.ne.s32.totalorder %s52, %s54
      %p58 = scmp.eq.s32.totalorder %s18, 0
      %p59 = por %p57, %p58
      %p60 = scmp.ne.s32.totalorder %s52, %s54
      %p61 = scmp.eq.s32.totalorder %s23, 1
      %p62 = por %p60, %p61
      %p63 = scmp.ne.s32.totalorder %s54, %s55
      %p64 = scmp.eq.s32.totalorder %s23, 0
      %p65 = por %p63, %p64
      %p66 = scmp.ne.s32.totalorder %s54, %s55
      %p67 = scmp.eq.s32.totalorder %s24, 1
      %p68 = por %p66, %p67
      %p70 = scmp.ne.s32.totalorder %s55, %s69
      %p71 = scmp.eq.s32.totalorder %s24, 0
      %p72 = por %p70, %p71
      %s74 = sadd.s32 %s73, 1
      %p77 = scmp.eq.s32.totalorder %s18, 1
      %p78 = scmp.ne.s32.totalorder %s73, %s75
      %p79 = scmp.eq.s32.totalorder %s18, 0
      %p80 = por %p78, %p79
      %p81 = scmp.ne.s32.totalorder %s73, %s75
      %p82 = scmp.eq.s32.totalorder %s23, 1
      %p83 = por %p81, %p82
      %p84 = scmp.ne.s32.totalorder %s75, %s76
      %p85 = scmp.eq.s32.totalorder %s23, 0
      %p86 = por %p84, %p85
      %p87 = scmp.ne.s32.totalorder %s75, %s76
      %p88 = scmp.eq.s32.totalorder %s24, 1
      %p89 = por %p87, %p88
      %p91 = scmp.ne.s32.totalorder %s76, %s90
      %p92 = scmp.eq.s32.totalorder %s24, 0
      %p93 = por %p91, %p92
      %s95 = sadd.s32 %s94, 1
      %p98 = scmp.eq.s32.totalorder %s18, 1
      %p99 = scmp.ne.s32.totalorder %s94, %s96
      %p100 = scmp.eq.s32.totalorder %s18, 0
      %p101 = por %p99, %p100
      %p102 = scmp.ne.s32.totalorder %s94, %s96
      %p103 = scmp.eq.s32.totalorder %s23, 1
      %p104 = por %p102, %p103
      %p105 = scmp.ne.s32.totalorder %s96, %s97
      %p106 = scmp.eq.s32.totalorder %s23, 0
      %p107 = por %p105, %p106
      %p108 = scmp.ne.s32.totalorder %s96, %s97
      %p109 = scmp.eq.s32.totalorder %s24, 1
      %p110 = por %p108, %p109
      %p112 = scmp.ne.s32.totalorder %s97, %s111
      %p113 = scmp.eq.s32.totalorder %s24, 0
      %p114 = por %p112, %p113
      %s115 = ssub.s32 %s18, %s25
      %p116 = scmp.eq.s32.totalorder %s115, 0
      %s118 = sadd.s32 %s117, 1
      %s119 = scalar_select %p116, %s117, %s118
      %p122 = pneg %p116
      %p123 = scmp.eq.s32.totalorder %s18, 1
      %p124 = por %p122, %p123
      %p125 = scmp.ne.s32.totalorder %s117, %s120
      %p126 = scmp.eq.s32.totalorder %s18, 0
      %p127 = por %p125, %p126
      %p128 = scmp.ne.s32.totalorder %s117, %s120
      %p129 = scmp.eq.s32.totalorder %s23, 1
      %p130 = por %p128, %p129
      %p131 = scmp.ne.s32.totalorder %s120, %s121
      %p132 = scmp.eq.s32.totalorder %s23, 0
      %p133 = por %p131, %p132
      %p134 = scmp.ne.s32.totalorder %s120, %s121
      %p135 = scmp.eq.s32.totalorder %s24, 1
      %p136 = por %p134, %p135
      %p138 = scmp.ne.s32.totalorder %s121, %s137
      %p139 = scmp.eq.s32.totalorder %s24, 0
      %p140 = por %p138, %p139
      %p141 = scmp.le.s32.totalorder 1, %s18
      %p142 = scmp.lt.s32.totalorder %s18, 3
      %p143 = pnand %p141, %p142
      %p144 = pneg %p143
      // Predicated region
      $region9: #{tpu_custom_call.1} parent=5 // pred_check
        _
      $region10: #{tpu_custom_call.1} parent=5 // pred_check_branch
        %146 = sbr.rel (%p143) target = $region12
      $region11: #{tpu_custom_call.1} parent=5 // pred_region
        %s147 = ssub.s32 %s18, 1
        // Predicated region
        $region13: #{tpu_custom_call.1} parent=11 // pred_check
          %p148 = pneg %p65
        $region14: #{tpu_custom_call.1} parent=11 // pred_check_branch
          %150 = sbr.rel (%p148) target = $region16
        $region15: #{tpu_custom_call.1} parent=11 // pred_region
          %s152 = ssub.s32 512, 512
          %153 = vsyncadd [#allocation7], %s152
          %s154 = sshll.u32 [#allocation6], 4
          %s155 = int_to_ptr.vmem [resolvable:$true] %s154
          %160 = dma.hbm_to_vmem [thread:$0]  %s1, 512, %s155, [#allocation7], 256, 256, 16
        $region16: #{tpu_custom_call.1} parent=11 // pred_fallthru
          _
        // Predicated region
        $region17: #{tpu_custom_call.1} parent=11 // pred_check
          %p161 = pneg %p86
        $region18: #{tpu_custom_call.1} parent=11 // pred_check_branch
          %163 = sbr.rel (%p161) target = $region20
        $region19: #{tpu_custom_call.1} parent=11 // pred_region
          %s165 = ssub.s32 128, 128
          %166 = vsyncadd [#allocation7], %s165
          %s168 = sshll.u32 [#allocation8], 4
          %s169 = int_to_ptr.vmem [resolvable:$true] %s168
          %171 = dma.hbm_to_vmem [thread:$0]  %s2, 128, %s169, [#allocation7]
        $region20: #{tpu_custom_call.1} parent=11 // pred_fallthru
          _
        // Predicated region
        $region21: #{tpu_custom_call.1} parent=11 // pred_check
          %p172 = pneg %p107
        $region22: #{tpu_custom_call.1} parent=11 // pred_check_branch
          %174 = sbr.rel (%p172) target = $region24
        $region23: #{tpu_custom_call.1} parent=11 // pred_region
          %s176 = ssub.s32 128, 128
          %177 = vsyncadd [#allocation10], %s176
          %s179 = sshll.u32 [#allocation9], 4
          %s180 = int_to_ptr.vmem [resolvable:$true] %s179
          %182 = dma.hbm_to_vmem [thread:$0]  %s3, 128, %s180, [#allocation10]
        $region24: #{tpu_custom_call.1} parent=11 // pred_fallthru
          _
      $region12: #{tpu_custom_call.1} parent=5 // pred_fallthru
        _
      %p183 = scmp.lt.s32.totalorder %s18, 2
      // Predicated region
      $region25: #{tpu_custom_call.1} parent=5 // pred_check
        %p184 = pneg %p183
      $region26: #{tpu_custom_call.1} parent=5 // pred_check_branch
        %186 = sbr.rel (%p184) target = $region28
      $region27: #{tpu_custom_call.1} parent=5 // pred_region
        // Predicated region
        $region29: #{tpu_custom_call.1} parent=27 // pred_check
          %p187 = pneg %p38
        $region30: #{tpu_custom_call.1} parent=27 // pred_check_branch
          %189 = sbr.rel (%p187) target = $region32
        $region31: #{tpu_custom_call.1} parent=27 // pred_region
          %s190 = sand.u32 %s28, 1
          %s191 = scalar_lea.sflag [#allocation4], %s190
          %s192 = sand.u32 %s28, 1
          %s193 = smul.addr %s192, 16
          %s194 = scalar_lea.vmem [#allocation3], %s193
          %s196 = ssub.s32 256, 256
          %197 = vsyncadd %s191, %s196
          %s198 = smul.addr %s18, 2
          %s199 = smul.addr %s198, 128
          %s200 = scalar_lea.hbm %s0, %s199
          %s202 = sshll.u32 %s194, 4
          %s203 = int_to_ptr.vmem [resolvable:$true] %s202
          %205 = dma.hbm_to_vmem [thread:$0]  %s200, 256, %s203, %s191
        $region32: #{tpu_custom_call.1} parent=27 // pred_fallthru
          _
      $region28: #{tpu_custom_call.1} parent=5 // pred_fallthru
        _
      %p206 = scmp.le.s32.totalorder 1, %s18
      %p207 = scmp.lt.s32.totalorder %s18, 3
      %p208 = pnand %p206, %p207
      %p209 = pneg %p208
      // Predicated region
      $region33: #{tpu_custom_call.1} parent=5 // pred_check
        _
      $region34: #{tpu_custom_call.1} parent=5 // pred_check_branch
        %211 = sbr.rel (%p208) target = $region36
      $region35: #{tpu_custom_call.1} parent=5 // pred_region
        %s212 = ssub.s32 %s18, 1
        %s213 = sand.u32 %s31, 1
        %s214 = scalar_lea.sflag [#allocation4], %s213
        %s215 = sand.u32 %s31, 1
        %s216 = smul.addr %s215, 16
        %s217 = scalar_lea.vmem [#allocation3], %s216
        // Predicated region
        $region37: #{tpu_custom_call.1} parent=35 // pred_check
          %p218 = pneg %p44
        $region38: #{tpu_custom_call.1} parent=35 // pred_check_branch
          %220 = sbr.rel (%p218) target = $region40
        $region39: #{tpu_custom_call.1} parent=35 // pred_region
          %221 = dma.done %s214, 256
        $region40: #{tpu_custom_call.1} parent=35 // pred_fallthru
          _
        // Predicated region
        $region41: #{tpu_custom_call.1} parent=35 // pred_check
          %p222 = pneg %p65
        $region42: #{tpu_custom_call.1} parent=35 // pred_check_branch
          %224 = sbr.rel (%p222) target = $region44
        $region43: #{tpu_custom_call.1} parent=35 // pred_region
          %225 = dma.done [#allocation7], 512
        $region44: #{tpu_custom_call.1} parent=35 // pred_fallthru
          _
        // Predicated region
        $region45: #{tpu_custom_call.1} parent=35 // pred_check
          %p226 = pneg %p86
        $region46: #{tpu_custom_call.1} parent=35 // pred_check_branch
          %228 = sbr.rel (%p226) target = $region48
        $region47: #{tpu_custom_call.1} parent=35 // pred_region
          %229 = dma.done [#allocation7], 128
        $region48: #{tpu_custom_call.1} parent=35 // pred_fallthru
          _
        // Predicated region
        $region49: #{tpu_custom_call.1} parent=35 // pred_check
          %p230 = pneg %p107
        $region50: #{tpu_custom_call.1} parent=35 // pred_check_branch
          %232 = sbr.rel (%p230) target = $region52
        $region51: #{tpu_custom_call.1} parent=35 // pred_region
          %233 = dma.done [#allocation10], 128
        $region52: #{tpu_custom_call.1} parent=35 // pred_fallthru
          _
        %s234 = sand.u32 %s31, 1
        %s235 = scalar_lea.sflag [#allocation4], %s234
        %s236 = sand.u32 %s31, 1
        %s237 = smul.addr %s236, 16
        %s238 = scalar_lea.vmem [#allocation3], %s237
        %p239 = pneg %p44
        %p240 = pneg %p41
        %p241 = pneg %p65
        %p242 = pneg %p62
        %p243 = pneg %p86
        %p244 = pneg %p83
        %p245 = pneg %p107
        %p246 = pneg %p104
        %p247 = pneg %p133
        %p248 = pneg %p130
        %s249 = sand.u32 %s120, 1
        %s250 = scalar_lea.sflag [#allocation5], %s249
        %s251 = sand.u32 %s120, 1
        %s252 = smul.addr %s251, 16
        %s253 = scalar_lea.vmem [#allocation11], %s252
        %v254 = vld [vmem:[#allocation6] sm:$0xff]
        %v255 = vld [vmem:[#allocation6 + $0x8] sm:$0xff]
        %v256 = vld [vmem:[#allocation6 + $0x10] sm:$0xff]
        %v257 = vld [vmem:[#allocation6 + $0x18] sm:$0xff]
        %v258 = vld [vmem:[%s217] sm:$0xff]
        %v259 = vld [vmem:[%s217 + $0x8] sm:$0xff]
        %260 = vrot.lane.b32.xlu0 %v258, 17
        %v261 = vpop.permute.xlu0 %260
        %262 = vrot.lane.b32.xlu0 %v259, 17
        %v263 = vpop.permute.xlu0 %262
        %v264 = vlaneseq
        %v265 = vand.u32 %v264, 127
        %vm266 = vcmp.lt.s32.totalorder %v265, 17
        %v267 = vsel %vm266, %v261, %v263
        %v268 = vsel %vm266, %v263, %v261
        %v269 = vlaneseq
        %v270 = vshrl.u32 %v269, 7
        %v271 = vsub.s32 0, %v270
        %v272 = vrot.slane %v254, %v271
        %v273 = vlaneseq
        %v274 = vshrl.u32 %v273, 7
        %v275 = vsub.s32 0, %v274
        %v276 = vrot.slane %v255, %v275
        %v277 = vmul.f32 %v268, %v272
        %v278 = vmul.f32 %v267, %v276
        %279 = vst [vmem:[#allocation2] sm:$0xff] %v277
        %280 = vst [vmem:[#allocation2 + $0x8] sm:$0xff] %v278
        %281 = vrot.lane.b32.xlu0 %v258, 16
        %v282 = vpop.permute.xlu0 %281
        %283 = vrot.lane.b32.xlu0 %v259, 16
        %v284 = vpop.permute.xlu0 %283
        %vm285 = vcmp.lt.s32.totalorder %v265, 16
        %v286 = vsel %vm285, %v282, %v284
        %v287 = vsel %vm285, %v284, %v282
        %v288 = vlaneseq
        %v289 = vshrl.u32 %v288, 7
        %v290 = vsub.s32 1, %v289
        %v291 = vrot.slane %v254, %v290
        %v292 = vlaneseq
        %v293 = vshrl.u32 %v292, 7
        %v294 = vsub.s32 1, %v293
        %v295 = vrot.slane %v255, %v294
        %v296 = vmul.f32 %v287, %v291
        %v297 = vmul.f32 %v286, %v295
        %298 = vst [vmem:[#allocation2 + $0x10] sm:$0xff] %v296
        %299 = vst [vmem:[#allocation2 + $0x18] sm:$0xff] %v297
        %300 = vrot.lane.b32.xlu0 %v258, 15
        %v301 = vpop.permute.xlu0 %300
        %302 = vrot.lane.b32.xlu0 %v259, 15
        %v303 = vpop.permute.xlu0 %302
        %vm304 = vcmp.lt.s32.totalorder %v265, 15
        %v305 = vsel %vm304, %v301, %v303
        %v306 = vsel %vm304, %v303, %v301
        %v307 = vlaneseq
        %v308 = vshrl.u32 %v307, 7
        %v309 = vsub.s32 2, %v308
        %v310 = vrot.slane %v254, %v309
        %v311 = vlaneseq
        %v312 = vshrl.u32 %v311, 7
        %v313 = vsub.s32 2, %v312
        %v314 = vrot.slane %v255, %v313
        %v315 = vmul.f32 %v306, %v310
        %v316 = vmul.f32 %v305, %v314
        %317 = vst [vmem:[#allocation2 + $0x20] sm:$0xff] %v315
        %318 = vst [vmem:[#allocation2 + $0x28] sm:$0xff] %v316
        %319 = vrot.lane.b32.xlu0 %v258, 1
        %v320 = vpop.permute.xlu0 %319
        %321 = vrot.lane.b32.xlu0 %v259, 1
        %v322 = vpop.permute.xlu0 %321
        %vm323 = vcmp.lt.s32.totalorder %v265, 1
        %v324 = vsel %vm323, %v320, %v322
        %v325 = vsel %vm323, %v322, %v320
        %v326 = vlaneseq
        %v327 = vshrl.u32 %v326, 7
        %v328 = vsub.s32 3, %v327
        %v329 = vrot.slane %v254, %v328
        %v330 = vlaneseq
        %v331 = vshrl.u32 %v330, 7
        %v332 = vsub.s32 3, %v331
        %v333 = vrot.slane %v255, %v332
        %v334 = vmul.f32 %v325, %v329
        %v335 = vmul.f32 %v324, %v333
        %336 = vst [vmem:[#allocation2 + $0x30] sm:$0xff] %v334
        %337 = vst [vmem:[#allocation2 + $0x38] sm:$0xff] %v335
        %338 = vst [vmem:[#allocation2 + $0x40] sm:$0xff] %v258
        %339 = vst [vmem:[#allocation2 + $0x48] sm:$0xff] %v259
        %340 = vrot.lane.b32.xlu0 %v258, 127
        %v341 = vpop.permute.xlu0 %340
        %342 = vrot.lane.b32.xlu0 %v259, 127
        %v343 = vpop.permute.xlu0 %342
        %vm344 = vcmp.lt.s32.totalorder %v265, 127
        %v345 = vsel %vm344, %v341, %v343
        %v346 = vsel %vm344, %v343, %v341
        %v347 = vlaneseq
        %v348 = vshrl.u32 %v347, 7
        %v349 = vsub.s32 5, %v348
        %v350 = vrot.slane %v254, %v349
        %v351 = vlaneseq
        %v352 = vshrl.u32 %v351, 7
        %v353 = vsub.s32 5, %v352
        %v354 = vrot.slane %v255, %v353
        %v355 = vmul.f32 %v345, %v350
        %v356 = vmul.f32 %v346, %v354
        %357 = vst [vmem:[#allocation2 + $0x50] sm:$0xff] %v355
        %358 = vst [vmem:[#allocation2 + $0x58] sm:$0xff] %v356
        %359 = vrot.lane.b32.xlu0 %v258, 113
        %v360 = vpop.permute.xlu0 %359
        %361 = vrot.lane.b32.xlu0 %v259, 113
        %v362 = vpop.permute.xlu0 %361
        %vm363 = vcmp.lt.s32.totalorder %v265, 113
        %v364 = vsel %vm363, %v360, %v362
        %v365 = vsel %vm363, %v362, %v360
        %v366 = vlaneseq
        %v367 = vshrl.u32 %v366, 7
        %v368 = vsub.s32 6, %v367
        %v369 = vrot.slane %v254, %v368
        %v370 = vlaneseq
        %v371 = vshrl.u32 %v370, 7
        %v372 = vsub.s32 6, %v371
        %v373 = vrot.slane %v255, %v372
        %v374 = vmul.f32 %v364, %v369
        %v375 = vmul.f32 %v365, %v373
        %376 = vst [vmem:[#allocation2 + $0x60] sm:$0xff] %v374
        %377 = vst [vmem:[#allocation2 + $0x68] sm:$0xff] %v375
        %378 = vrot.lane.b32.xlu0 %v258, 112
        %v379 = vpop.permute.xlu0 %378
        %380 = vrot.lane.b32.xlu0 %v259, 112
        %v381 = vpop.permute.xlu0 %380
        %vm382 = vcmp.lt.s32.totalorder %v265, 112
        %v383 = vsel %vm382, %v379, %v381
        %v384 = vsel %vm382, %v381, %v379
        %v385 = vlaneseq
        %v386 = vshrl.u32 %v385, 7
        %v387 = vsub.s32 7, %v386
        %v388 = vrot.slane %v254, %v387
        %v389 = vlaneseq
        %v390 = vshrl.u32 %v389, 7
        %v391 = vsub.s32 7, %v390
        %v392 = vrot.slane %v255, %v391
        %v393 = vmul.f32 %v383, %v388
        %v394 = vmul.f32 %v384, %v392
        %395 = vst [vmem:[#allocation2 + $0x70] sm:$0xff] %v393
        %396 = vst [vmem:[#allocation2 + $0x78] sm:$0xff] %v394
        %397 = vrot.lane.b32.xlu0 %v258, 111
        %v398 = vpop.permute.xlu0 %397
        %399 = vrot.lane.b32.xlu0 %v259, 111
        %v400 = vpop.permute.xlu0 %399
        %vm401 = vcmp.lt.s32.totalorder %v265, 111
        %v402 = vsel %vm401, %v398, %v400
        %v403 = vsel %vm401, %v400, %v398
        %v404 = vlaneseq
        %v405 = vshrl.u32 %v404, 7
        %v406 = vsub.s32 0, %v405
        %v407 = vrot.slane %v256, %v406
        %v408 = vlaneseq
        %v409 = vshrl.u32 %v408, 7
        %v410 = vsub.s32 0, %v409
        %v411 = vrot.slane %v257, %v410
        %v412 = vmul.f32 %v402, %v407
        %v413 = vmul.f32 %v403, %v411
        %414 = vst [vmem:[#allocation2 + $0x80] sm:$0xff] %v412
        %415 = vst [vmem:[#allocation2 + $0x88] sm:$0xff] %v413
        %416 = vst [vmem:[#allocation2 + $0x90] sm:$0xff] %v258
        %417 = vst [vmem:[#allocation2 + $0x98] sm:$0xff] %v259
        %v418 = vld [vmem:[#allocation8] sm:$0xff]
        %v419 = vld [vmem:[#allocation2] sm:$0xff]
        %v420 = vld [vmem:[#allocation2 + $0x8] sm:$0xff]
        %v421 = vld [vmem:[#allocation2 + $0x10] sm:$0xff]
        %v422 = vld [vmem:[#allocation2 + $0x18] sm:$0xff]
        %v423 = vld [vmem:[#allocation2 + $0x20] sm:$0xff]
        %v424 = vld [vmem:[#allocation2 + $0x28] sm:$0xff]
        %v425 = vld [vmem:[#allocation2 + $0x30] sm:$0xff]
        %v426 = vld [vmem:[#allocation2 + $0x38] sm:$0xff]
        %v427 = vld [vmem:[#allocation2 + $0x40] sm:$0xff]
        %v428 = vld [vmem:[#allocation2 + $0x48] sm:$0xff]
        %v429 = vld [vmem:[#allocation2 + $0x50] sm:$0xff]
        %v430 = vld [vmem:[#allocation2 + $0x58] sm:$0xff]
        %v431 = vld [vmem:[#allocation2 + $0x60] sm:$0xff]
        %v432 = vld [vmem:[#allocation2 + $0x68] sm:$0xff]
        %v433 = vld [vmem:[#allocation2 + $0x70] sm:$0xff]
        %v434 = vld [vmem:[#allocation2 + $0x78] sm:$0xff]
        %v435 = vld [vmem:[#allocation2 + $0x80] sm:$0xff]
        %v436 = vld [vmem:[#allocation2 + $0x88] sm:$0xff]
        %v437 = vld [vmem:[#allocation2 + $0x90] sm:$0xff]
        %v438 = vld [vmem:[#allocation2 + $0x98] sm:$0xff]
        %vm439 = vcmask 654336
        %v441 = vsel %vm439, %v418, 0
        %443 = vmatprep.subr.mxu0 0.0
        %444 = vmatpush1.msra.mxu0 0.0
        %445 = vmatprep.subr.mxu0 0.0
        %446 = vmatpush1.msra.mxu0 0.0
        %447 = vmatprep.subr.mxu0 0.0
        %448 = vmatpush1.msra.mxu0 0.0
        %449 = vmatprep.subr.mxu0 0.0
        %450 = vmatpush1.msra.mxu0 0.0
        %451 = vmatprep.subr.mxu0 0.0
        %452 = vmatpush1.msra.mxu0 0.0
        %453 = vmatprep.subr.mxu0 0.0
        %454 = vmatpush1.msra.mxu0 0.0
        %455 = vmatprep.subr.mxu0 %v438
        %456 = vmatpush1.msra.mxu0 %v437
        %457 = vmatprep.subr.mxu0 %v436
        %458 = vmatpush1.msra.mxu0 %v435
        %459 = vmatprep.subr.mxu0 %v434
        %460 = vmatpush1.msra.mxu0 %v433
        %461 = vmatprep.subr.mxu0 %v432
        %462 = vmatpush1.msra.mxu0 %v431
        %463 = vmatprep.subr.mxu0 %v430
        %464 = vmatpush1.msra.mxu0 %v429
        %465 = vmatprep.subr.mxu0 %v428
        %466 = vmatpush1.msra.mxu0 %v427
        %467 = vmatprep.subr.mxu0 %v426
        %468 = vmatpush1.msra.mxu0 %v425
        %469 = vmatprep.subr.mxu0 %v424
        %470 = vmatpush1.msra.mxu0 %v423
        %471 = vmatprep.subr.mxu0 %v422
        %472 = vmatpush1.msra.mxu0 %v421
        %473 = vmatprep.subr.mxu0 %v420
        %474 = vmatpush1.msra.mxu0 %v419
        %475 = vmatprep.subr.mxu0 0.0
        %476 = vmatpush2.msra.mxu0 0.0
        %477 = vmatprep.subr.mxu0 0.0
        %478 = vmatpush2.msra.mxu0 0.0
        %479 = vmatprep.subr.mxu0 0.0
        %480 = vmatpush2.msra.mxu0 0.0
        %481 = vmatprep.subr.mxu0 0.0
        %482 = vmatpush2.msra.mxu0 0.0
        %483 = vmatprep.subr.mxu0 0.0
        %484 = vmatpush2.msra.mxu0 0.0
        %485 = vmatprep.subr.mxu0 0.0
        %486 = vmatpush2.msra.mxu0 0.0
        %487 = vmatprep.subr.mxu0 0.0
        %488 = vmatpush2.msra.mxu0 0.0
        %489 = vmatprep.subr.mxu0 0.0
        %490 = vmatpush2.msra.mxu0 0.0
        %491 = vmatprep.subr.mxu0 0.0
        %492 = vmatpush2.msra.mxu0 0.0
        %493 = vmatprep.subr.mxu0 0.0
        %494 = vmatpush2.msra.mxu0 0.0
        %495 = vmatprep.subr.mxu0 0.0
        %496 = vmatpush2.msra.mxu0 0.0
        %497 = vmatprep.subr.mxu0 0.0
        %498 = vmatpush2.msra.mxu0 0.0
        %499 = vmatprep.subr.mxu0 0.0
        %500 = vmatpush2.msra.mxu0 0.0
        %501 = vmatprep.subr.mxu0 0.0
        %502 = vmatpush2.msra.mxu0 0.0
        %503 = vmatprep.subr.mxu0 0.0
        %504 = vmatpush2.msra.mxu0 0.0
        %505 = vmatprep.subr.mxu0 0.0
        %506 = vmatpush2.msra.mxu0 0.0
        %507 = vmatprep.mubr.f32.mxu0 0.0
        %508 = vmatmul.mubr.f32.gmra.mxu0 %v441
        %v509 = vpop.f32.mrf.mxu0
        %v510 = vadd.f32 0.0, %v509
        %v511 = vpop.f32.mrf.mxu0
        %v512 = vadd.f32 0.0, %v511
        %513 = vdwg.mxu0
        %v514 = vmax.f32 %v510, 0.0
        %v515 = vmax.f32 %v512, 0.0
        %516 = vrot.lane.b32.xlu0 %v514, 17
        %v517 = vpop.permute.xlu0 %516
        %518 = vrot.lane.b32.xlu0 %v515, 17
        %v519 = vpop.permute.xlu0 %518
        %v520 = vsel %vm266, %v517, %v519
        %v521 = vsel %vm266, %v519, %v517
        %v522 = vmul.f32 %v521, %v272
        %v523 = vmul.f32 %v520, %v276
        %524 = vst [vmem:[#allocation2] sm:$0xff] %v522
        %525 = vst [vmem:[#allocation2 + $0x8] sm:$0xff] %v523
        %526 = vrot.lane.b32.xlu0 %v514, 16
        %v527 = vpop.permute.xlu0 %526
        %528 = vrot.lane.b32.xlu0 %v515, 16
        %v529 = vpop.permute.xlu0 %528
        %v530 = vsel %vm285, %v527, %v529
        %v531 = vsel %vm285, %v529, %v527
        %v532 = vmul.f32 %v531, %v291
        %v533 = vmul.f32 %v530, %v295
        %534 = vst [vmem:[#allocation2 + $0x10] sm:$0xff] %v532
        %535 = vst [vmem:[#allocation2 + $0x18] sm:$0xff] %v533
        %536 = vrot.lane.b32.xlu0 %v514, 15
        %v537 = vpop.permute.xlu0 %536
        %538 = vrot.lane.b32.xlu0 %v515, 15
        %v539 = vpop.permute.xlu0 %538
        %v540 = vsel %vm304, %v537, %v539
        %v541 = vsel %vm304, %v539, %v537
        %v542 = vmul.f32 %v541, %v310
        %v543 = vmul.f32 %v540, %v314
        %544 = vst [vmem:[#allocation2 + $0x20] sm:$0xff] %v542
        %545 = vst [vmem:[#allocation2 + $0x28] sm:$0xff] %v543
        %546 = vrot.lane.b32.xlu0 %v514, 1
        %v547 = vpop.permute.xlu0 %546
        %548 = vrot.lane.b32.xlu0 %v515, 1
        %v549 = vpop.permute.xlu0 %548
        %v550 = vsel %vm323, %v547, %v549
        %v551 = vsel %vm323, %v549, %v547
        %v552 = vmul.f32 %v551, %v329
        %v553 = vmul.f32 %v550, %v333
        %554 = vst [vmem:[#allocation2 + $0x30] sm:$0xff] %v552
        %555 = vst [vmem:[#allocation2 + $0x38] sm:$0xff] %v553
        %556 = vst [vmem:[#allocation2 + $0x40] sm:$0xff] %v514
        %557 = vst [vmem:[#allocation2 + $0x48] sm:$0xff] %v515
        %558 = vrot.lane.b32.xlu0 %v514, 127
        %v559 = vpop.permute.xlu0 %558
        %560 = vrot.lane.b32.xlu0 %v515, 127
        %v561 = vpop.permute.xlu0 %560
        %v562 = vsel %vm344, %v559, %v561
        %v563 = vsel %vm344, %v561, %v559
        %v564 = vmul.f32 %v562, %v350
        %v565 = vmul.f32 %v563, %v354
        %566 = vst [vmem:[#allocation2 + $0x50] sm:$0xff] %v564
        %567 = vst [vmem:[#allocation2 + $0x58] sm:$0xff] %v565
        %568 = vrot.lane.b32.xlu0 %v514, 113
        %v569 = vpop.permute.xlu0 %568
        %570 = vrot.lane.b32.xlu0 %v515, 113
        %v571 = vpop.permute.xlu0 %570
        %v572 = vsel %vm363, %v569, %v571
        %v573 = vsel %vm363, %v571, %v569
        %v574 = vmul.f32 %v572, %v369
        %v575 = vmul.f32 %v573, %v373
        %576 = vst [vmem:[#allocation2 + $0x60] sm:$0xff] %v574
        %577 = vst [vmem:[#allocation2 + $0x68] sm:$0xff] %v575
        %578 = vrot.lane.b32.xlu0 %v514, 112
        %v579 = vpop.permute.xlu0 %578
        %580 = vrot.lane.b32.xlu0 %v515, 112
        %v581 = vpop.permute.xlu0 %580
        %v582 = vsel %vm382, %v579, %v581
        %v583 = vsel %vm382, %v581, %v579
        %v584 = vmul.f32 %v582, %v388
        %v585 = vmul.f32 %v583, %v392
        %586 = vst [vmem:[#allocation2 + $0x70] sm:$0xff] %v584
        %587 = vst [vmem:[#allocation2 + $0x78] sm:$0xff] %v585
        %588 = vrot.lane.b32.xlu0 %v514, 111
        %v589 = vpop.permute.xlu0 %588
        %590 = vrot.lane.b32.xlu0 %v515, 111
        %v591 = vpop.permute.xlu0 %590
        %v592 = vsel %vm401, %v589, %v591
        %v593 = vsel %vm401, %v591, %v589
        %v594 = vmul.f32 %v592, %v407
        %v595 = vmul.f32 %v593, %v411
        %596 = vst [vmem:[#allocation2 + $0x80] sm:$0xff] %v594
        %597 = vst [vmem:[#allocation2 + $0x88] sm:$0xff] %v595
        %v598 = vld [vmem:[#allocation9] sm:$0xff]
        %v599 = vld [vmem:[#allocation2] sm:$0xff]
        %v600 = vld [vmem:[#allocation2 + $0x8] sm:$0xff]
        %v601 = vld [vmem:[#allocation2 + $0x10] sm:$0xff]
        %v602 = vld [vmem:[#allocation2 + $0x18] sm:$0xff]
        %v603 = vld [vmem:[#allocation2 + $0x20] sm:$0xff]
        %v604 = vld [vmem:[#allocation2 + $0x28] sm:$0xff]
        %v605 = vld [vmem:[#allocation2 + $0x30] sm:$0xff]
        %v606 = vld [vmem:[#allocation2 + $0x38] sm:$0xff]
        %v607 = vld [vmem:[#allocation2 + $0x40] sm:$0xff]
        %v608 = vld [vmem:[#allocation2 + $0x48] sm:$0xff]
        %v609 = vld [vmem:[#allocation2 + $0x50] sm:$0xff]
        %v610 = vld [vmem:[#allocation2 + $0x58] sm:$0xff]
        %v611 = vld [vmem:[#allocation2 + $0x60] sm:$0xff]
        %v612 = vld [vmem:[#allocation2 + $0x68] sm:$0xff]
        %v613 = vld [vmem:[#allocation2 + $0x70] sm:$0xff]
        %v614 = vld [vmem:[#allocation2 + $0x78] sm:$0xff]
        %v615 = vld [vmem:[#allocation2 + $0x80] sm:$0xff]
        %v616 = vld [vmem:[#allocation2 + $0x88] sm:$0xff]
        %v617 = vld [vmem:[#allocation2 + $0x90] sm:$0xff]
        %v618 = vld [vmem:[#allocation2 + $0x98] sm:$0xff]
        %v620 = vsel %vm439, %v598, 0
        %622 = vmatprep.subr.mxu0 0.0
        %623 = vmatpush1.msra.mxu0 0.0
        %624 = vmatprep.subr.mxu0 0.0
        %625 = vmatpush1.msra.mxu0 0.0
        %626 = vmatprep.subr.mxu0 0.0
        %627 = vmatpush1.msra.mxu0 0.0
        %628 = vmatprep.subr.mxu0 0.0
        %629 = vmatpush1.msra.mxu0 0.0
        %630 = vmatprep.subr.mxu0 0.0
        %631 = vmatpush1.msra.mxu0 0.0
        %632 = vmatprep.subr.mxu0 0.0
        %633 = vmatpush1.msra.mxu0 0.0
        %634 = vmatprep.subr.mxu0 %v618
        %635 = vmatpush1.msra.mxu0 %v617
        %636 = vmatprep.subr.mxu0 %v616
        %637 = vmatpush1.msra.mxu0 %v615
        %638 = vmatprep.subr.mxu0 %v614
        %639 = vmatpush1.msra.mxu0 %v613
        %640 = vmatprep.subr.mxu0 %v612
        %641 = vmatpush1.msra.mxu0 %v611
        %642 = vmatprep.subr.mxu0 %v610
        %643 = vmatpush1.msra.mxu0 %v609
        %644 = vmatprep.subr.mxu0 %v608
        %645 = vmatpush1.msra.mxu0 %v607
        %646 = vmatprep.subr.mxu0 %v606
        %647 = vmatpush1.msra.mxu0 %v605
        %648 = vmatprep.subr.mxu0 %v604
        %649 = vmatpush1.msra.mxu0 %v603
        %650 = vmatprep.subr.mxu0 %v602
        %651 = vmatpush1.msra.mxu0 %v601
        %652 = vmatprep.subr.mxu0 %v600
        %653 = vmatpush1.msra.mxu0 %v599
        %654 = vmatprep.subr.mxu0 0.0
        %655 = vmatpush2.msra.mxu0 0.0
        %656 = vmatprep.subr.mxu0 0.0
        %657 = vmatpush2.msra.mxu0 0.0
        %658 = vmatprep.subr.mxu0 0.0
        %659 = vmatpush2.msra.mxu0 0.0
        %660 = vmatprep.subr.mxu0 0.0
        %661 = vmatpush2.msra.mxu0 0.0
        %662 = vmatprep.subr.mxu0 0.0
        %663 = vmatpush2.msra.mxu0 0.0
        %664 = vmatprep.subr.mxu0 0.0
        %665 = vmatpush2.msra.mxu0 0.0
        %666 = vmatprep.subr.mxu0 0.0
        %667 = vmatpush2.msra.mxu0 0.0
        %668 = vmatprep.subr.mxu0 0.0
        %669 = vmatpush2.msra.mxu0 0.0
        %670 = vmatprep.subr.mxu0 0.0
        %671 = vmatpush2.msra.mxu0 0.0
        %672 = vmatprep.subr.mxu0 0.0
        %673 = vmatpush2.msra.mxu0 0.0
        %674 = vmatprep.subr.mxu0 0.0
        %675 = vmatpush2.msra.mxu0 0.0
        %676 = vmatprep.subr.mxu0 0.0
        %677 = vmatpush2.msra.mxu0 0.0
        %678 = vmatprep.subr.mxu0 0.0
        %679 = vmatpush2.msra.mxu0 0.0
        %680 = vmatprep.subr.mxu0 0.0
        %681 = vmatpush2.msra.mxu0 0.0
        %682 = vmatprep.subr.mxu0 0.0
        %683 = vmatpush2.msra.mxu0 0.0
        %684 = vmatprep.subr.mxu0 0.0
        %685 = vmatpush2.msra.mxu0 0.0
        %686 = vmatprep.mubr.f32.mxu0 0.0
        %687 = vmatmul.mubr.f32.gmra.mxu0 %v620
        %v688 = vpop.f32.mrf.mxu0
        %v689 = vadd.f32 0.0, %v688
        %v690 = vpop.f32.mrf.mxu0
        %v691 = vadd.f32 0.0, %v690
        %692 = vdwg.mxu0
        %v693 = vmax.f32 %v689, 0.0
        %v694 = vmax.f32 %v691, 0.0
        %695 = vst [vmem:[%s253] sm:$0xff] %v693
        %696 = vst [vmem:[%s253 + $0x8] sm:$0xff] %v694
        %s697 = sand.u32 %s120, 1
        %s698 = scalar_lea.sflag [#allocation5], %s697
        %s699 = sand.u32 %s120, 1
        %s700 = smul.addr %s699, 16
        %s701 = scalar_lea.vmem [#allocation11], %s700
        // Predicated region
        $region53: #{tpu_custom_call.1} parent=35 // pred_check
          %p702 = pneg %p130
        $region54: #{tpu_custom_call.1} parent=35 // pred_check_branch
          %704 = sbr.rel (%p702) target = $region56
        $region55: #{tpu_custom_call.1} parent=35 // pred_region
          %s706 = ssub.s32 256, 256
          %707 = vsyncadd %s698, %s706
          %s708 = smul.addr %s23, 2
          %s709 = smul.addr %s708, 128
          %s710 = scalar_lea.hbm %s4, %s709
          %s712 = sshll.u32 %s701, 4
          %s713 = int_to_ptr.vmem [resolvable:$true] %s712
          %715 = dma.vmem_to_hbm [thread:$0]  %s713, 256, %s710, %s698
        $region56: #{tpu_custom_call.1} parent=35 // pred_fallthru
          _
      $region36: #{tpu_custom_call.1} parent=5 // pred_fallthru
        _
      %p716 = scmp.le.s32.totalorder 2, %s18
      // Predicated region
      $region57: #{tpu_custom_call.1} parent=5 // pred_check
        %p717 = pneg %p716
      $region58: #{tpu_custom_call.1} parent=5 // pred_check_branch
        %719 = sbr.rel (%p717) target = $region60
      $region59: #{tpu_custom_call.1} parent=5 // pred_region
        %s720 = ssub.s32 %s18, 2
        // Predicated region
        $region61: #{tpu_custom_call.1} parent=59 // pred_check
          %p721 = pneg %p136
        $region62: #{tpu_custom_call.1} parent=59 // pred_check_branch
          %723 = sbr.rel (%p721) target = $region64
        $region63: #{tpu_custom_call.1} parent=59 // pred_region
          %s724 = sand.u32 %s121, 1
          %s725 = scalar_lea.sflag [#allocation5], %s724
          %s726 = sand.u32 %s121, 1
          %s727 = smul.addr %s726, 16
          %s728 = scalar_lea.vmem [#allocation11], %s727
          %729 = dma.done %s725, 256
        $region64: #{tpu_custom_call.1} parent=59 // pred_fallthru
          _
      $region60: #{tpu_custom_call.1} parent=5 // pred_fallthru
        _
    $region6: #{tpu_custom_call.1} parent=1 // loop_footer
      %s22 = sadd.s32 1, %s18
    $region7: #{tpu_custom_call.1} parent=1 // loop_footer_branch
      %17 = sbr.rel target = $region3
    $region8: #{tpu_custom_call.1} parent=1 // loop_exit
      _
    %730 = vsyncpa [#allocation4], 1
    %s731 = scalar_lea.sflag [#allocation4], 1
    %732 = vsyncpa %s731, 1
    %733 = vsyncpa [#allocation7], 1
    %734 = vsyncpa [#allocation10], 1
    %735 = vsyncpa [#allocation5], 1
    %s736 = scalar_lea.sflag [#allocation5], 1
    %737 = vsyncpa %s736, 1

</llo_original>
